<compile_context>
chip_gen: v6e
topology: v6e:2x2x1
jax: 0.10.0
libtpu: 0.0.40
codegen_flags: <defaults>
</compile_context>

<pallas_src>
import functools

import jax
import jax.numpy as jnp
from jax.experimental import pallas as pl
from jax.experimental.pallas import tpu as pltpu


def _round_up(n, m):
    return ((n + m - 1) // m) * m


def _pnl_forward_kernel(x_ref, w1_ref, w2_ref, w3_ref, out_ref):
    # INPUT node: identity transfer -> value = external input tile.
    x = x_ref[...]

    # hidden node: single afferent (input -> hidden), Logistic transfer.
    # MXU matmul with f32 accumulation; sigmoid in f32 on EUP/VPU.
    h_pre = jnp.dot(x, w1_ref[...], preferred_element_type=jnp.float32)
    h = jax.nn.sigmoid(h_pre)

    # output node: collate_afferents = (hidden @ W2) + (input @ W3), as two
    # accumulating dots (no concat copy).  The astype is a no-op in the f32
    # path and a cheap VPU cast in the bf16-operand path.
    z = jnp.dot(h.astype(w2_ref.dtype), w2_ref[...],
                preferred_element_type=jnp.float32)
    z = z + jnp.dot(x, w3_ref[...], preferred_element_type=jnp.float32)
    out_ref[...] = jax.nn.sigmoid(z).astype(out_ref.dtype)


def prepare_weights(w1, w2, w3, use_bf16=False):
    """Hoisted, once-per-model weight preparation (dtype of the MXU operands)."""
    dt = jnp.bfloat16 if use_bf16 else jnp.float32
    return (jnp.asarray(w1, dt), jnp.asarray(w2, dt), jnp.asarray(w3, dt))


@functools.partial(jax.jit, static_argnames=("tb",))
def pnl_forward(x, w1, w2, w3, *, tb=None):
    B, D_in = x.shape
    D_h = w1.shape[1]
    D_out = w2.shape[1]
    assert w1.shape == (D_in, D_h)
    assert w2.shape == (D_h, D_out)
    assert w3.shape == (D_in, D_out)

    op_dtype = w1.dtype  # f32 or bf16 (set by prepare_weights)

    # Batch tile: multiple of 8 sublanes, up to 1024 rows.  For moderate
    # batches aim at >=2 tiles so v7x's two TensorCores both get work.
    b8 = _round_up(B, 8)
    if tb is None:
        if b8 <= 16:
            tb = b8
        else:
            tb = min(1024, _round_up((b8 + 1) // 2, 8))
    tb = _round_up(tb, 8)
    bp = _round_up(B, tb)
    n_tiles = bp // tb

    # Only the batch axis is padded (zero rows); no lane padding.
    if bp != B:
        xp = jnp.zeros((bp, D_in), x.dtype).at[:B].set(x)
    else:
        xp = x
    xp = xp.astype(op_dtype)

    # Honest VMEM budget: double-buffered x/out tiles + (double-buffered)
    # resident weights, doubled, plus a small fixed headroom for compiler
    # scratch.  A few MiB total -- far below every generation's VMEM.
    isz = jnp.dtype(op_dtype).itemsize
    need = (2 * tb * D_in * isz                      # x tiles
            + 2 * tb * D_out * 4                     # out tiles (f32)
            + 2 * (D_in * D_h + D_h * D_out + D_in * D_out) * isz)  # weights
    vmem_limit = int(2 * need) + (8 << 20)

    out_padded = pl.pallas_call(
        _pnl_forward_kernel,
        out_shape=jax.ShapeDtypeStruct((bp, D_out), jnp.float32),
        grid=(n_tiles,),
        in_specs=[
            pl.BlockSpec((tb, D_in), lambda i: (i, 0)),      # x tile
            pl.BlockSpec((D_in, D_h), lambda i: (0, 0)),     # W1 (resident)
            pl.BlockSpec((D_h, D_out), lambda i: (0, 0)),    # W2 (resident)
            pl.BlockSpec((D_in, D_out), lambda i: (0, 0)),   # W3 (resident)
        ],
        out_specs=pl.BlockSpec((tb, D_out), lambda i: (i, 0)),
        compiler_params=pltpu.CompilerParams(
            dimension_semantics=("parallel",),
            vmem_limit_bytes=vmem_limit,
        ),
    )(xp, w1, w2, w3)

    # Drop batch padding rows (sigmoid(0)=0.5 garbage) if any.
    return out_padded[:B] if bp != B else out_padded


def pnl_forward_reference(x, w1, w2, w3):
    h = jax.nn.sigmoid(x @ w1)
    return jax.nn.sigmoid(h @ w2 + x @ w3)


if __name__ == "__main__":
    key = jax.random.PRNGKey(0)
    k_x, k_w1, k_w2, k_w3, k_xl = jax.random.split(key, 5)

    # small shapes consistent with a PsyNeuLink autodiff MLP composition
    B, D_in, D_h, D_out = 8, 16, 32, 8

    x = jax.random.normal(k_x, (B, D_in), dtype=jnp.float32)
    # deterministic projection matrices (proj.matrix parameters)
    w1 = jax.random.normal(k_w1, (D_in, D_h), dtype=jnp.float32) * 0.1
    w2 = jax.random.normal(k_w2, (D_h, D_out), dtype=jnp.float32) * 0.1
    w3 = jax.random.normal(k_w3, (D_in, D_out), dtype=jnp.float32) * 0.1

    # Weight preparation is hoisted out of the hot path (done once per dtype).
    w1_f, w2_f, w3_f = prepare_weights(w1, w2, w3, use_bf16=False)
    w1_b, w2_b, w3_b = prepare_weights(w1, w2, w3, use_bf16=True)

    # 1) small batch, f32, single grid step
    out = jax.block_until_ready(pnl_forward(x, w1_f, w2_f, w3_f))
    ref = pnl_forward_reference(x, w1, w2, w3)
    assert out.shape == (B, D_out)
    assert jnp.allclose(out, ref, atol=1e-5, rtol=1e-5), "f32 small-batch mismatch"

    # 2) larger, non-multiple batch, f32.  Default tiling -> 2 tiles
    #    (exercises batch padding, resident weights, parallel grid axis).
    BL = 100
    xl = jax.random.normal(k_xl, (BL, D_in), dtype=jnp.float32)
    out_l = jax.block_until_ready(pnl_forward(xl, w1_f, w2_f, w3_f))
    ref_l = pnl_forward_reference(xl, w1, w2, w3)
    assert out_l.shape == (BL, D_out)
    assert jnp.allclose(out_l, ref_l, atol=1e-5, rtol=1e-5), "f32 batched mismatch"

    # 2b) explicit small tile -> grid of 4 steps
    out_t = jax.block_until_ready(pnl_forward(xl, w1_f, w2_f, w3_f, tb=32))
    assert jnp.allclose(out_t, ref_l, atol=1e-5, rtol=1e-5), "f32 tiled mismatch"

    # 3) bf16 MXU operands (v6e/v7x-friendly), f32 accumulation + f32 sigmoid
    out_bf = jax.block_until_ready(pnl_forward(xl, w1_b, w2_b, w3_b))
    assert out_bf.shape == (BL, D_out)
    assert jnp.allclose(out_bf, ref_l, atol=3e-2, rtol=0.0), "bf16 batched mismatch"

    # TODO(synk): training path (_gen_llvm_training_*), optimizer step, logging
    # (log_values/log_weights) and copy_weights_to_psyneulink are host/graph-
    # compiler glue with no kernel equivalent.
    print("KERNEL_OK")
</pallas_src>

<mosaic_0001>
module attributes {stable_mosaic.version = 11 : i64} {
  func.func @_pnl_forward_kernel(%arg0: i32, %arg1: memref<8x16xf32, #tpu.memory_space<vmem>>, %arg2: memref<16x32xf32, #tpu.memory_space<vmem>>, %arg3: memref<32x8xf32, #tpu.memory_space<vmem>>, %arg4: memref<16x8xf32, #tpu.memory_space<vmem>>, %arg5: memref<8x8xf32, #tpu.memory_space<vmem>>) attributes {dimension_semantics = [#tpu.dimension_semantics<parallel>], iteration_bounds = array<i64: 1>, scalar_prefetch = 0 : i64, scratch_operands = 0 : i64, tpu.core_type = #tpu.core_type<tc>, window_params = [{transform_indices = @transform_0, window_bounds = array<i64: 8, 16>}, {pipeline_mode = #tpu.pipeline_mode<synchronous>, transform_indices = @transform_1, window_bounds = array<i64: 16, 32>}, {pipeline_mode = #tpu.pipeline_mode<synchronous>, transform_indices = @transform_2, window_bounds = array<i64: 32, 8>}, {pipeline_mode = #tpu.pipeline_mode<synchronous>, transform_indices = @transform_3, window_bounds = array<i64: 16, 8>}, {transform_indices = @transform_4, window_bounds = array<i64: 8, 8>}]} {
    %c0 = arith.constant 0 : index
    %c0_0 = arith.constant 0 : index
    %0 = vector.load %arg1[%c0, %c0_0] : memref<8x16xf32, #tpu.memory_space<vmem>>, vector<8x16xf32>
    %c0_1 = arith.constant 0 : index
    %c0_2 = arith.constant 0 : index
    %1 = vector.load %arg2[%c0_1, %c0_2] : memref<16x32xf32, #tpu.memory_space<vmem>>, vector<16x32xf32>
    %cst = arith.constant dense<0.000000e+00> : vector<8x32xf32>
    %2 = tpu.matmul %0, %1, %cst {dimension_numbers = #tpu.dot_dimension_numbers<[1], [0], [0], [1], [0, 0, 1, 1], [], []>} : vector<8x16xf32>, vector<16x32xf32>, vector<8x32xf32> -> vector<8x32xf32>
    %3 = arith.negf %2 : vector<8x32xf32>
    %4 = math.exp %3 : vector<8x32xf32>
    %cst_3 = arith.constant 1.000000e+00 : f32
    %5 = vector.broadcast %cst_3 : f32 to vector<8x32xf32>
    %6 = arith.addf %5, %4 : vector<8x32xf32>
    %7 = arith.divf %5, %6 : vector<8x32xf32>
    %c0_4 = arith.constant 0 : index
    %c0_5 = arith.constant 0 : index
    %8 = vector.load %arg3[%c0_4, %c0_5] : memref<32x8xf32, #tpu.memory_space<vmem>>, vector<32x8xf32>
    %cst_6 = arith.constant dense<0.000000e+00> : vector<8x8xf32>
    %9 = tpu.matmul %7, %8, %cst_6 {dimension_numbers = #tpu.dot_dimension_numbers<[1], [0], [0], [1], [0, 0, 1, 1], [], []>} : vector<8x32xf32>, vector<32x8xf32>, vector<8x8xf32> -> vector<8x8xf32>
    %c0_7 = arith.constant 0 : index
    %c0_8 = arith.constant 0 : index
    %10 = vector.load %arg4[%c0_7, %c0_8] : memref<16x8xf32, #tpu.memory_space<vmem>>, vector<16x8xf32>
    %cst_9 = arith.constant dense<0.000000e+00> : vector<8x8xf32>
    %11 = tpu.matmul %0, %10, %cst_9 {dimension_numbers = #tpu.dot_dimension_numbers<[1], [0], [0], [1], [0, 0, 1, 1], [], []>} : vector<8x16xf32>, vector<16x8xf32>, vector<8x8xf32> -> vector<8x8xf32>
    %12 = arith.addf %9, %11 : vector<8x8xf32>
    %13 = arith.negf %12 : vector<8x8xf32>
    %14 = math.exp %13 : vector<8x8xf32>
    %cst_10 = arith.constant 1.000000e+00 : f32
    %15 = vector.broadcast %cst_10 : f32 to vector<8x8xf32>
    %16 = arith.addf %15, %14 : vector<8x8xf32>
    %17 = arith.divf %15, %16 : vector<8x8xf32>
    %c0_11 = arith.constant 0 : index
    %c0_12 = arith.constant 0 : index
    %18 = vector.load %arg5[%c0_11, %c0_12] : memref<8x8xf32, #tpu.memory_space<vmem>>, vector<8x8xf32>
    tpu.vector_store %arg5[%c0_11, %c0_12], %17 {strides = array<i32>} : memref<8x8xf32, #tpu.memory_space<vmem>>, vector<8x8xf32>,
    return
  }
  func.func @transform_0(%arg0: i32) -> (i32, i32) {
    %c0_i32 = arith.constant 0 : i32
    %c0_i32_0 = arith.constant 0 : i32
    return %arg0, %c0_i32 : i32, i32
  }
  func.func @transform_1(%arg0: i32) -> (i32, i32) {
    %c0_i32 = arith.constant 0 : i32
    %c0_i32_0 = arith.constant 0 : i32
    %c0_i32_1 = arith.constant 0 : i32
    return %c0_i32, %c0_i32_0 : i32, i32
  }
  func.func @transform_2(%arg0: i32) -> (i32, i32) {
    %c0_i32 = arith.constant 0 : i32
    %c0_i32_0 = arith.constant 0 : i32
    %c0_i32_1 = arith.constant 0 : i32
    return %c0_i32, %c0_i32_0 : i32, i32
  }
  func.func @transform_3(%arg0: i32) -> (i32, i32) {
    %c0_i32 = arith.constant 0 : i32
    %c0_i32_0 = arith.constant 0 : i32
    %c0_i32_1 = arith.constant 0 : i32
    return %c0_i32, %c0_i32_0 : i32, i32
  }
  func.func @transform_4(%arg0: i32) -> (i32, i32) {
    %c0_i32 = arith.constant 0 : i32
    %c0_i32_0 = arith.constant 0 : i32
    return %arg0, %c0_i32 : i32, i32
  }
}

</mosaic_0001>

<llo_original>
// kernel: pnl_forward.1
$region0: #{pnl_forward.1}
  #allocation0 [shape = 'u32[]', space=smem, size = 0x4, offset = 0x4, fixed_abs, tag = 'smem constant byte address 0x4 - core index']
  #allocation1 [shape = 'u32[144,128]{1,0:T(1,128)}', space=vmem, size = 0x12000, scoped, tag = 'internal scratch']
  %s0 = inlined_call_operand.vmem [shape: f32[8,16], index: 0, kind: input, shape index: {}]
  %s1 = inlined_call_operand.vmem [shape: f32[16,32], index: 1, kind: input, shape index: {}]
  %s2 = inlined_call_operand.vmem [shape: f32[32,8], index: 2, kind: input, shape index: {}]
  %s3 = inlined_call_operand.vmem [shape: f32[16,8], index: 3, kind: input, shape index: {}]
  %s4 = inlined_call_operand.hbm [shape: f32[8,8], index: 4, kind: output, shape index: {}]
  %s5 = sld [smem:[#allocation0]]
  $region26: #{pnl_forward.1} parent=0
    _
  %s7 = ssub.s32 1, %s5
  %s8 = scalar_select 0, %s7, %s5
  $region1: #{pnl_forward.1} parent=0
    #allocation2 [shape = 'u8[4096]{0}', space=vmem, size = 0x1000, scoped, tag = 'output window, operand 0, single buffered']
    #allocation3 [shape = 's32[1]{0}', space=sflag, size = 0x4, scoped, tag = 'scoped memory for pnl_forward.1']
    %9 = vsyncpa [#allocation3], 0
    // Predicated region
    $region2: #{pnl_forward.1} parent=1 // pred_check
      _
    $region3: #{pnl_forward.1} parent=1 // pred_check_branch
      %11 = sbr.rel (0) target = $region5
    $region4: #{pnl_forward.1} parent=1 // pred_region
      _
    $region5: #{pnl_forward.1} parent=1 // pred_fallthru
      _
    // Predicated region
    $region6: #{pnl_forward.1} parent=1 // pred_check
      _
    $region7: #{pnl_forward.1} parent=1 // pred_check_branch
      %13 = sbr.rel (0) target = $region9
    $region8: #{pnl_forward.1} parent=1 // pred_region
      _
    $region9: #{pnl_forward.1} parent=1 // pred_fallthru
      _
    // Predicated region
    $region10: #{pnl_forward.1} parent=1 // pred_check
      _
    $region11: #{pnl_forward.1} parent=1 // pred_check_branch
      %15 = sbr.rel (0) target = $region13
    $region12: #{pnl_forward.1} parent=1 // pred_region
      _
    $region13: #{pnl_forward.1} parent=1 // pred_fallthru
      _
    // Predicated region
    $region14: #{pnl_forward.1} parent=1 // pred_check
      _
    $region15: #{pnl_forward.1} parent=1 // pred_check_branch
      %17 = sbr.rel (0) target = $region17
    $region16: #{pnl_forward.1} parent=1 // pred_region
      _
    $region17: #{pnl_forward.1} parent=1 // pred_fallthru
      _
    %v18 = vld [vmem:[%s0] sm:$0xff]
    %v19 = vld [vmem:[%s1] sm:$0xff]
    %v20 = vld [vmem:[%s1 + $0x8] sm:$0xff]
    %vm21 = vcmask 130048
    %v23 = vsel %vm21, %v18, 0
    %25 = vmatprep.subr.mxu0 0.0
    %26 = vmatpush1.msra.mxu0 0.0
    %27 = vmatprep.subr.mxu0 0.0
    %28 = vmatpush1.msra.mxu0 0.0
    %29 = vmatprep.subr.mxu0 0.0
    %30 = vmatpush1.msra.mxu0 0.0
    %31 = vmatprep.subr.mxu0 0.0
    %32 = vmatpush1.msra.mxu0 0.0
    %33 = vmatprep.subr.mxu0 0.0
    %34 = vmatpush1.msra.mxu0 0.0
    %35 = vmatprep.subr.mxu0 0.0
    %36 = vmatpush1.msra.mxu0 0.0
    %37 = vmatprep.subr.mxu0 0.0
    %38 = vmatpush1.msra.mxu0 0.0
    %39 = vmatprep.subr.mxu0 0.0
    %40 = vmatpush1.msra.mxu0 0.0
    %41 = vmatprep.subr.mxu0 0.0
    %42 = vmatpush1.msra.mxu0 0.0
    %43 = vmatprep.subr.mxu0 0.0
    %44 = vmatpush1.msra.mxu0 0.0
    %45 = vmatprep.subr.mxu0 0.0
    %46 = vmatpush1.msra.mxu0 0.0
    %47 = vmatprep.subr.mxu0 0.0
    %48 = vmatpush1.msra.mxu0 0.0
    %49 = vmatprep.subr.mxu0 0.0
    %50 = vmatpush1.msra.mxu0 0.0
    %51 = vmatprep.subr.mxu0 0.0
    %52 = vmatpush1.msra.mxu0 0.0
    %53 = vmatprep.subr.mxu0 0.0
    %54 = vmatpush1.msra.mxu0 %v20
    %55 = vmatprep.subr.mxu0 0.0
    %56 = vmatpush1.msra.mxu0 %v19
    %57 = vmatprep.subr.mxu0 0.0
    %58 = vmatpush2.msra.mxu0 0.0
    %59 = vmatprep.subr.mxu0 0.0
    %60 = vmatpush2.msra.mxu0 0.0
    %61 = vmatprep.subr.mxu0 0.0
    %62 = vmatpush2.msra.mxu0 0.0
    %63 = vmatprep.subr.mxu0 0.0
    %64 = vmatpush2.msra.mxu0 0.0
    %65 = vmatprep.subr.mxu0 0.0
    %66 = vmatpush2.msra.mxu0 0.0
    %67 = vmatprep.subr.mxu0 0.0
    %68 = vmatpush2.msra.mxu0 0.0
    %69 = vmatprep.subr.mxu0 0.0
    %70 = vmatpush2.msra.mxu0 0.0
    %71 = vmatprep.subr.mxu0 0.0
    %72 = vmatpush2.msra.mxu0 0.0
    %73 = vmatprep.subr.mxu0 0.0
    %74 = vmatpush2.msra.mxu0 0.0
    %75 = vmatprep.subr.mxu0 0.0
    %76 = vmatpush2.msra.mxu0 0.0
    %77 = vmatprep.subr.mxu0 0.0
    %78 = vmatpush2.msra.mxu0 0.0
    %79 = vmatprep.subr.mxu0 0.0
    %80 = vmatpush2.msra.mxu0 0.0
    %81 = vmatprep.subr.mxu0 0.0
    %82 = vmatpush2.msra.mxu0 0.0
    %83 = vmatprep.subr.mxu0 0.0
    %84 = vmatpush2.msra.mxu0 0.0
    %85 = vmatprep.subr.mxu0 0.0
    %86 = vmatpush2.msra.mxu0 0.0
    %87 = vmatprep.subr.mxu0 0.0
    %88 = vmatpush2.msra.mxu0 0.0
    %89 = vmatprep.mubr.f32.mxu0 0.0
    %90 = vmatmul.mubr.f32.gmra.mxu0 %v23
    %v91 = vpop.f32.mrf.mxu0
    %v92 = vadd.f32 0.0, %v91
    %v93 = vpop.f32.mrf.mxu0
    %94 = vdwg.mxu0
    %v95 = vxor.u32 %v92, 2147483648
    %v96 = vmul.f32 %v95, 1.442695
    %v97 = vpow.pop %v96
    %v98 = vadd.f32 %v97, 1.0
    %v99 = vrcp.pop %v98
    %v100 = vmul.f32 1.0, %v99
    %v101 = vld [vmem:[%s2] sm:$0xff]
    %v102 = vld [vmem:[%s2 + $0x8] sm:$0xff]
    %v103 = vld [vmem:[%s2 + $0x10] sm:$0xff]
    %v104 = vld [vmem:[%s2 + $0x18] sm:$0xff]
    %v105 = vld [vmem:[%s3] sm:$0xff]
    %v106 = vld [vmem:[%s3 + $0x8] sm:$0xff]
    %107 = vmatprep.subr.mxu0 0.0
    %108 = vmatpush1.msra.mxu0 0.0
    %109 = vmatprep.subr.mxu0 0.0
    %110 = vmatpush1.msra.mxu0 0.0
    %111 = vmatprep.subr.mxu0 0.0
    %112 = vmatpush1.msra.mxu0 0.0
    %113 = vmatprep.subr.mxu0 0.0
    %114 = vmatpush1.msra.mxu0 0.0
    %115 = vmatprep.subr.mxu0 0.0
    %116 = vmatpush1.msra.mxu0 0.0
    %117 = vmatprep.subr.mxu0 0.0
    %118 = vmatpush1.msra.mxu0 0.0
    %119 = vmatprep.subr.mxu0 0.0
    %120 = vmatpush1.msra.mxu0 0.0
    %121 = vmatprep.subr.mxu0 0.0
    %122 = vmatpush1.msra.mxu0 0.0
    %123 = vmatprep.subr.mxu0 0.0
    %124 = vmatpush1.msra.mxu0 0.0
    %125 = vmatprep.subr.mxu0 0.0
    %126 = vmatpush1.msra.mxu0 0.0
    %127 = vmatprep.subr.mxu0 0.0
    %128 = vmatpush1.msra.mxu0 0.0
    %129 = vmatprep.subr.mxu0 0.0
    %130 = vmatpush1.msra.mxu0 0.0
    %131 = vmatprep.subr.mxu0 0.0
    %132 = vmatpush1.msra.mxu0 0.0
    %133 = vmatprep.subr.mxu0 0.0
    %134 = vmatpush1.msra.mxu0 0.0
    %135 = vmatprep.subr.mxu0 0.0
    %136 = vmatpush1.msra.mxu0 %v106
    %137 = vmatprep.subr.mxu0 0.0
    %138 = vmatpush1.msra.mxu0 %v105
    %139 = vmatprep.subr.mxu0 0.0
    %140 = vmatpush2.msra.mxu0 0.0
    %141 = vmatprep.subr.mxu0 0.0
    %142 = vmatpush2.msra.mxu0 0.0
    %143 = vmatprep.subr.mxu0 0.0
    %144 = vmatpush2.msra.mxu0 0.0
    %145 = vmatprep.subr.mxu0 0.0
    %146 = vmatpush2.msra.mxu0 0.0
    %147 = vmatprep.subr.mxu0 0.0
    %148 = vmatpush2.msra.mxu0 0.0
    %149 = vmatprep.subr.mxu0 0.0
    %150 = vmatpush2.msra.mxu0 0.0
    %151 = vmatprep.subr.mxu0 0.0
    %152 = vmatpush2.msra.mxu0 0.0
    %153 = vmatprep.subr.mxu0 0.0
    %154 = vmatpush2.msra.mxu0 0.0
    %155 = vmatprep.subr.mxu0 0.0
    %156 = vmatpush2.msra.mxu0 0.0
    %157 = vmatprep.subr.mxu0 0.0
    %158 = vmatpush2.msra.mxu0 0.0
    %159 = vmatprep.subr.mxu0 0.0
    %160 = vmatpush2.msra.mxu0 0.0
    %161 = vmatprep.subr.mxu0 0.0
    %162 = vmatpush2.msra.mxu0 0.0
    %163 = vmatprep.subr.mxu0 0.0
    %164 = vmatpush2.msra.mxu0 0.0
    %165 = vmatprep.subr.mxu0 0.0
    %166 = vmatpush2.msra.mxu0 0.0
    %167 = vmatprep.subr.mxu0 0.0
    %168 = vmatpush2.msra.mxu0 0.0
    %169 = vmatprep.subr.mxu0 0.0
    %170 = vmatpush2.msra.mxu0 0.0
    %171 = vmatprep.mubr.f32.mxu0 0.0
    %172 = vmatmul.mubr.f32.gmra.mxu0 %v23
    %v173 = vpop.f32.mrf.mxu0
    %v174 = vadd.f32 0.0, %v173
    %v175 = vpop.f32.mrf.mxu0
    %176 = vdwg.mxu0
    %vm177 = vcmask 261120
    %v179 = vsel %vm177, %v100, 0
    %181 = vmatprep.subr.mxu0 0.0
    %182 = vmatpush1.msra.mxu0 0.0
    %183 = vmatprep.subr.mxu0 0.0
    %184 = vmatpush1.msra.mxu0 0.0
    %185 = vmatprep.subr.mxu0 0.0
    %186 = vmatpush1.msra.mxu0 0.0
    %187 = vmatprep.subr.mxu0 0.0
    %188 = vmatpush1.msra.mxu0 0.0
    %189 = vmatprep.subr.mxu0 0.0
    %190 = vmatpush1.msra.mxu0 0.0
    %191 = vmatprep.subr.mxu0 0.0
    %192 = vmatpush1.msra.mxu0 0.0
    %193 = vmatprep.subr.mxu0 0.0
    %194 = vmatpush1.msra.mxu0 0.0
    %195 = vmatprep.subr.mxu0 0.0
    %196 = vmatpush1.msra.mxu0 0.0
    %197 = vmatprep.subr.mxu0 0.0
    %198 = vmatpush1.msra.mxu0 0.0
    %199 = vmatprep.subr.mxu0 0.0
    %200 = vmatpush1.msra.mxu0 0.0
    %201 = vmatprep.subr.mxu0 0.0
    %202 = vmatpush1.msra.mxu0 0.0
    %203 = vmatprep.subr.mxu0 0.0
    %204 = vmatpush1.msra.mxu0 0.0
    %205 = vmatprep.subr.mxu0 0.0
    %206 = vmatpush1.msra.mxu0 %v104
    %207 = vmatprep.subr.mxu0 0.0
    %208 = vmatpush1.msra.mxu0 %v103
    %209 = vmatprep.subr.mxu0 0.0
    %210 = vmatpush1.msra.mxu0 %v102
    %211 = vmatprep.subr.mxu0 0.0
    %212 = vmatpush1.msra.mxu0 %v101
    %213 = vmatprep.subr.mxu0 0.0
    %214 = vmatpush2.msra.mxu0 0.0
    %215 = vmatprep.subr.mxu0 0.0
    %216 = vmatpush2.msra.mxu0 0.0
    %217 = vmatprep.subr.mxu0 0.0
    %218 = vmatpush2.msra.mxu0 0.0
    %219 = vmatprep.subr.mxu0 0.0
    %220 = vmatpush2.msra.mxu0 0.0
    %221 = vmatprep.subr.mxu0 0.0
    %222 = vmatpush2.msra.mxu0 0.0
    %223 = vmatprep.subr.mxu0 0.0
    %224 = vmatpush2.msra.mxu0 0.0
    %225 = vmatprep.subr.mxu0 0.0
    %226 = vmatpush2.msra.mxu0 0.0
    %227 = vmatprep.subr.mxu0 0.0
    %228 = vmatpush2.msra.mxu0 0.0
    %229 = vmatprep.subr.mxu0 0.0
    %230 = vmatpush2.msra.mxu0 0.0
    %231 = vmatprep.subr.mxu0 0.0
    %232 = vmatpush2.msra.mxu0 0.0
    %233 = vmatprep.subr.mxu0 0.0
    %234 = vmatpush2.msra.mxu0 0.0
    %235 = vmatprep.subr.mxu0 0.0
    %236 = vmatpush2.msra.mxu0 0.0
    %237 = vmatprep.subr.mxu0 0.0
    %238 = vmatpush2.msra.mxu0 0.0
    %239 = vmatprep.subr.mxu0 0.0
    %240 = vmatpush2.msra.mxu0 0.0
    %241 = vmatprep.subr.mxu0 0.0
    %242 = vmatpush2.msra.mxu0 0.0
    %243 = vmatprep.subr.mxu0 0.0
    %244 = vmatpush2.msra.mxu0 0.0
    %245 = vmatprep.mubr.f32.mxu0 0.0
    %246 = vmatmul.mubr.f32.gmra.mxu0 %v179
    %v247 = vpop.f32.mrf.mxu0
    %v248 = vadd.f32 %v174, %v247
    %v249 = vpop.f32.mrf.mxu0
    %250 = vdwg.mxu0
    %v251 = vxor.u32 %v248, 2147483648
    %v252 = vmul.f32 %v251, 1.442695
    %v253 = vpow.pop %v252
    %v254 = vadd.f32 %v253, 1.0
    %v255 = vrcp.pop %v254
    %v256 = vmul.f32 1.0, %v255
    %vm257 = vcmask 64512
    %258 = vst.msk [vmem:[#allocation2] sm:$0xff] %vm257, %v256
    // Predicated region
    $region18: #{pnl_forward.1} parent=1 // pred_check
      _
    $region19: #{pnl_forward.1} parent=1 // pred_check_branch
      %260 = sbr.rel (0) target = $region21
    $region20: #{pnl_forward.1} parent=1 // pred_region
      %s262 = ssub.s32 128, 128
      %263 = vsyncadd [#allocation3], %s262
      %s265 = sshll.u32 [#allocation2], 4
      %s266 = int_to_ptr.vmem [resolvable:$true] %s265
      %268 = dma.vmem_to_hbm [thread:$0]  %s266, 128, %s4, [#allocation3]
    $region21: #{pnl_forward.1} parent=1 // pred_fallthru
      _
    // Predicated region
    $region22: #{pnl_forward.1} parent=1 // pred_check
      _
    $region23: #{pnl_forward.1} parent=1 // pred_check_branch
      %270 = sbr.rel (0) target = $region25
    $region24: #{pnl_forward.1} parent=1 // pred_region
      %271 = dma.done [#allocation3], 128
    $region25: #{pnl_forward.1} parent=1 // pred_fallthru
      _
    %272 = vsyncpa [#allocation3], 1

</llo_original>
